<compile_context>
chip_gen: v7x
topology: tpu7x:2x2x1
jax: 0.10.0
libtpu: 0.0.40
codegen_flags: <defaults>
</compile_context>

<pallas_src>
import functools

import jax
import jax.numpy as jnp
from jax.experimental import pallas as pl
from jax.experimental.pallas import tpu as pltpu


def _round_up(n: int, m: int) -> int:
    return (n + m - 1) // m * m


def qnetwork_kernel(x_ref, w1_ref, b1_ref, w2_ref, b2_ref, w3_ref, b3_ref, o_ref):
    # In-kernel cast of the activation tile (no-op when weights are f32); keeps
    # the wrapper free of extra HBM passes. MXU accumulates in f32 throughout.
    x = x_ref[...].astype(w1_ref.dtype)
    h1 = jnp.dot(x, w1_ref[...], preferred_element_type=jnp.float32)
    h1 = jnp.maximum(h1 + b1_ref[...], 0.0)

    h2 = jnp.dot(h1.astype(w2_ref.dtype), w2_ref[...],
                 preferred_element_type=jnp.float32)
    h2 = jnp.maximum(h2 + b2_ref[...], 0.0)

    out = jnp.dot(h2.astype(w3_ref.dtype), w3_ref[...],
                  preferred_element_type=jnp.float32)
    o_ref[...] = (out + b3_ref[...]).astype(o_ref.dtype)


def init_params(key, state_size, hidden_size, action_size):
    """Logical params mimicking nn.Linear's uniform(-1/sqrt(fan_in), +...).
    Weights are stored as [in, out] (transpose of torch's [out, in]) so the
    kernel computes x @ W + b directly."""
    ks = jax.random.split(key, 6)

    def lin(kw, kb, fan_in, fan_out):
        bound = 1.0 / jnp.sqrt(fan_in)
        w = jax.random.uniform(kw, (fan_in, fan_out), jnp.float32, -bound, bound)
        b = jax.random.uniform(kb, (1, fan_out), jnp.float32, -bound, bound)
        return w, b

    w1, b1 = lin(ks[0], ks[1], state_size, hidden_size)
    w2, b2 = lin(ks[2], ks[3], hidden_size, hidden_size)
    w3, b3 = lin(ks[4], ks[5], hidden_size, action_size)
    return dict(w1=w1, b1=b1, w2=w2, b2=b2, w3=w3, b3=b3)


def prepare_params(params, compute_dtype=jnp.float32):
    """One-time param prep: cast weights to the matmul input dtype (e.g. bf16
    for inference on v5e or to halve weight DMA). Biases stay f32 because they
    are added to the f32 MXU accumulator. No padding of any dim.
    NOTE: compute_dtype=bfloat16 trades accuracy (won't meet 1e-5 tolerances)."""
    out = {}
    for k, v in params.items():
        out[k] = v.astype(compute_dtype) if k.startswith("w") else v.astype(jnp.float32)
    return out


def _pick_tb(batch: int) -> int:
    """Batch-tile heuristic. Small B: one tile (latency-bound). Large B:
    ~1024-row tiles (single-TC v5e/v6e roofline + low per-step overhead) with
    an even number of >=2 grid steps so v7x's 2 TensorCores stay balanced."""
    if batch <= 256:
        return _round_up(batch, 8)
    n_steps = max(2, pl.cdiv(batch, 1024))
    if n_steps % 2:
        n_steps += 1
    return _round_up(pl.cdiv(batch, n_steps), 8)


@functools.partial(jax.jit, static_argnames=("tb",))
def qnetwork_forward(x, params, *, tb=None):
    """x: [B, state_size]; params: dict of [in, out] weights and (1, out) biases
    (from prepare_params). Returns [B, action_size] float32 Q-values."""
    w1, b1 = params["w1"], params["b1"]
    w2, b2 = params["w2"], params["b2"]
    w3, b3 = params["w3"], params["b3"]

    B, S = x.shape
    H = w1.shape[1]
    A = w3.shape[1]

    if tb is None:
        tb = _pick_tb(B)
    grid = (pl.cdiv(B, tb),)  # partial last block allowed: rows are independent

    # Advisory cost for XLA's scheduler (this call is latency-bound at small B).
    flops = 2 * B * (S * H + H * H + H * A)
    bytes_accessed = (
        x.size * x.dtype.itemsize
        + sum(v.size * v.dtype.itemsize for v in params.values())
        + B * A * 4
    )
    cost = pl.CostEstimate(flops=flops, transcendentals=0,
                           bytes_accessed=bytes_accessed)

    out = pl.pallas_call(
        qnetwork_kernel,
        out_shape=jax.ShapeDtypeStruct((B, A), jnp.float32),
        grid=grid,
        in_specs=[
            # x: tiled along batch only; K dim stays at the true state_size.
            pl.BlockSpec((tb, S), lambda i: (i, 0)),
            # Weights / biases: constant index_map -> VMEM-resident, DMA'd once.
            pl.BlockSpec((S, H), lambda i: (0, 0)),
            pl.BlockSpec((1, H), lambda i: (0, 0)),
            pl.BlockSpec((H, H), lambda i: (0, 0)),
            pl.BlockSpec((1, H), lambda i: (0, 0)),
            pl.BlockSpec((H, A), lambda i: (0, 0)),
            pl.BlockSpec((1, A), lambda i: (0, 0)),
        ],
        # Output last dim = true action_size (full-array extent): no padded
        # writeback traffic and no post-kernel slice pass.
        out_specs=pl.BlockSpec((tb, A), lambda i: (i, 0)),
        compiler_params=pltpu.CompilerParams(
            dimension_semantics=("parallel",)),  # v7x: shard batch over 2 TCs
        cost_estimate=cost,
    )(x, w1, b1, w2, b2, w3, b3)

    return out
    # TODO(synk): for tiny-batch inference, fuse the downstream argmax/action
    # selection into this pallas_call to amortize launch + weight-DMA latency.


if __name__ == "__main__":
    key = jax.random.PRNGKey(0)
    k_x, k_p = jax.random.split(key)

    batch = 8
    state_size = 16
    hidden_size = 32
    action_size = 4

    x = jax.random.normal(k_x, (batch, state_size), jnp.float32)
    params = init_params(k_p, state_size, hidden_size, action_size)
    prepped = prepare_params(params)  # default f32 compute path (exact)

    out = qnetwork_forward(x, prepped)
    out = jax.block_until_ready(out)

    # Pure-JAX reference of the same forward pass.
    def ref(x, p):
        h1 = jnp.maximum(x @ p["w1"] + p["b1"], 0.0)
        h2 = jnp.maximum(h1 @ p["w2"] + p["b2"], 0.0)
        return h2 @ p["w3"] + p["b3"]

    expected = ref(x, params)
    assert out.shape == (batch, action_size)
    assert jnp.allclose(out, expected, atol=1e-5, rtol=1e-5)

    print("KERNEL_OK")
</pallas_src>

<mosaic_0001>
module attributes {stable_mosaic.version = 11 : i64} {
  func.func @qnetwork_kernel(%arg0: i32, %arg1: memref<8x16xf32, #tpu.memory_space<vmem>>, %arg2: memref<16x32xf32, #tpu.memory_space<vmem>>, %arg3: memref<1x32xf32, #tpu.memory_space<vmem>>, %arg4: memref<32x32xf32, #tpu.memory_space<vmem>>, %arg5: memref<1x32xf32, #tpu.memory_space<vmem>>, %arg6: memref<32x4xf32, #tpu.memory_space<vmem>>, %arg7: memref<1x4xf32, #tpu.memory_space<vmem>>, %arg8: memref<8x4xf32, #tpu.memory_space<vmem>>) attributes {dimension_semantics = [#tpu.dimension_semantics<parallel>], iteration_bounds = array<i64: 1>, scalar_prefetch = 0 : i64, scratch_operands = 0 : i64, tpu.core_type = #tpu.core_type<tc>, window_params = [{transform_indices = @transform_0, window_bounds = array<i64: 8, 16>}, {pipeline_mode = #tpu.pipeline_mode<synchronous>, transform_indices = @transform_1, window_bounds = array<i64: 16, 32>}, {pipeline_mode = #tpu.pipeline_mode<synchronous>, transform_indices = @transform_2, window_bounds = array<i64: 1, 32>}, {pipeline_mode = #tpu.pipeline_mode<synchronous>, transform_indices = @transform_3, window_bounds = array<i64: 32, 32>}, {pipeline_mode = #tpu.pipeline_mode<synchronous>, transform_indices = @transform_4, window_bounds = array<i64: 1, 32>}, {pipeline_mode = #tpu.pipeline_mode<synchronous>, transform_indices = @transform_5, window_bounds = array<i64: 32, 4>}, {pipeline_mode = #tpu.pipeline_mode<synchronous>, transform_indices = @transform_6, window_bounds = array<i64: 1, 4>}, {transform_indices = @transform_7, window_bounds = array<i64: 8, 4>}]} {
    %c0 = arith.constant 0 : index
    %c0_0 = arith.constant 0 : index
    %0 = vector.load %arg1[%c0, %c0_0] : memref<8x16xf32, #tpu.memory_space<vmem>>, vector<8x16xf32>
    %c0_1 = arith.constant 0 : index
    %c0_2 = arith.constant 0 : index
    %1 = vector.load %arg2[%c0_1, %c0_2] : memref<16x32xf32, #tpu.memory_space<vmem>>, vector<16x32xf32>
    %cst = arith.constant dense<0.000000e+00> : vector<8x32xf32>
    %2 = tpu.matmul %0, %1, %cst {dimension_numbers = #tpu.dot_dimension_numbers<[1], [0], [0], [1], [0, 0, 1, 1], [], []>} : vector<8x16xf32>, vector<16x32xf32>, vector<8x32xf32> -> vector<8x32xf32>
    %c0_3 = arith.constant 0 : index
    %c0_4 = arith.constant 0 : index
    %3 = vector.load %arg3[%c0_3, %c0_4] : memref<1x32xf32, #tpu.memory_space<vmem>>, vector<1x32xf32>
    %4 = vector.broadcast %3 : vector<1x32xf32> to vector<8x32xf32>
    %5 = arith.addf %2, %4 : vector<8x32xf32>
    %cst_5 = arith.constant 0.000000e+00 : f32
    %6 = vector.broadcast %cst_5 : f32 to vector<8x32xf32>
    %7 = arith.maximumf %5, %6 : vector<8x32xf32>
    %c0_6 = arith.constant 0 : index
    %c0_7 = arith.constant 0 : index
    %8 = vector.load %arg4[%c0_6, %c0_7] : memref<32x32xf32, #tpu.memory_space<vmem>>, vector<32x32xf32>
    %cst_8 = arith.constant dense<0.000000e+00> : vector<8x32xf32>
    %9 = tpu.matmul %7, %8, %cst_8 {dimension_numbers = #tpu.dot_dimension_numbers<[1], [0], [0], [1], [0, 0, 1, 1], [], []>} : vector<8x32xf32>, vector<32x32xf32>, vector<8x32xf32> -> vector<8x32xf32>
    %c0_9 = arith.constant 0 : index
    %c0_10 = arith.constant 0 : index
    %10 = vector.load %arg5[%c0_9, %c0_10] : memref<1x32xf32, #tpu.memory_space<vmem>>, vector<1x32xf32>
    %11 = vector.broadcast %10 : vector<1x32xf32> to vector<8x32xf32>
    %12 = arith.addf %9, %11 : vector<8x32xf32>
    %cst_11 = arith.constant 0.000000e+00 : f32
    %13 = vector.broadcast %cst_11 : f32 to vector<8x32xf32>
    %14 = arith.maximumf %12, %13 : vector<8x32xf32>
    %c0_12 = arith.constant 0 : index
    %c0_13 = arith.constant 0 : index
    %15 = vector.load %arg6[%c0_12, %c0_13] : memref<32x4xf32, #tpu.memory_space<vmem>>, vector<32x4xf32>
    %cst_14 = arith.constant dense<0.000000e+00> : vector<8x4xf32>
    %16 = tpu.matmul %14, %15, %cst_14 {dimension_numbers = #tpu.dot_dimension_numbers<[1], [0], [0], [1], [0, 0, 1, 1], [], []>} : vector<8x32xf32>, vector<32x4xf32>, vector<8x4xf32> -> vector<8x4xf32>
    %c0_15 = arith.constant 0 : index
    %c0_16 = arith.constant 0 : index
    %17 = vector.load %arg7[%c0_15, %c0_16] : memref<1x4xf32, #tpu.memory_space<vmem>>, vector<1x4xf32>
    %18 = vector.broadcast %17 : vector<1x4xf32> to vector<8x4xf32>
    %19 = arith.addf %16, %18 : vector<8x4xf32>
    %c0_17 = arith.constant 0 : index
    %c0_18 = arith.constant 0 : index
    %20 = vector.load %arg8[%c0_17, %c0_18] : memref<8x4xf32, #tpu.memory_space<vmem>>, vector<8x4xf32>
    tpu.vector_store %arg8[%c0_17, %c0_18], %19 {strides = array<i32>} : memref<8x4xf32, #tpu.memory_space<vmem>>, vector<8x4xf32>,
    return
  }
  func.func @transform_0(%arg0: i32) -> (i32, i32) {
    %c0_i32 = arith.constant 0 : i32
    %c0_i32_0 = arith.constant 0 : i32
    return %arg0, %c0_i32 : i32, i32
  }
  func.func @transform_1(%arg0: i32) -> (i32, i32) {
    %c0_i32 = arith.constant 0 : i32
    %c0_i32_0 = arith.constant 0 : i32
    %c0_i32_1 = arith.constant 0 : i32
    return %c0_i32, %c0_i32_0 : i32, i32
  }
  func.func @transform_2(%arg0: i32) -> (i32, i32) {
    %c0_i32 = arith.constant 0 : i32
    %c0_i32_0 = arith.constant 0 : i32
    %c0_i32_1 = arith.constant 0 : i32
    return %c0_i32, %c0_i32_0 : i32, i32
  }
  func.func @transform_3(%arg0: i32) -> (i32, i32) {
    %c0_i32 = arith.constant 0 : i32
    %c0_i32_0 = arith.constant 0 : i32
    %c0_i32_1 = arith.constant 0 : i32
    return %c0_i32, %c0_i32_0 : i32, i32
  }
  func.func @transform_4(%arg0: i32) -> (i32, i32) {
    %c0_i32 = arith.constant 0 : i32
    %c0_i32_0 = arith.constant 0 : i32
    %c0_i32_1 = arith.constant 0 : i32
    return %c0_i32, %c0_i32_0 : i32, i32
  }
  func.func @transform_5(%arg0: i32) -> (i32, i32) {
    %c0_i32 = arith.constant 0 : i32
    %c0_i32_0 = arith.constant 0 : i32
    %c0_i32_1 = arith.constant 0 : i32
    return %c0_i32, %c0_i32_0 : i32, i32
  }
  func.func @transform_6(%arg0: i32) -> (i32, i32) {
    %c0_i32 = arith.constant 0 : i32
    %c0_i32_0 = arith.constant 0 : i32
    %c0_i32_1 = arith.constant 0 : i32
    return %c0_i32, %c0_i32_0 : i32, i32
  }
  func.func @transform_7(%arg0: i32) -> (i32, i32) {
    %c0_i32 = arith.constant 0 : i32
    %c0_i32_0 = arith.constant 0 : i32
    return %arg0, %c0_i32 : i32, i32
  }
}

</mosaic_0001>

<llo_original>
// kernel: qnetwork_forward.1
$region0: #{qnetwork_forward.1}
  #allocation0 [shape = 'u32[]', space=smem, size = 0x4, offset = 0x4, fixed_abs, tag = 'smem constant byte address 0x4 - core index']
  #allocation1 [shape = 'u32[144,128]{1,0:T(1,128)}', space=vmem, size = 0x12000, scoped, tag = 'internal scratch']
  %s0 = inlined_call_operand.hbm [shape: f32[8,16], index: 0, kind: input, shape index: {}]
  %s1 = inlined_call_operand.vmem [shape: f32[16,32], index: 1, kind: input, shape index: {}]
  %s2 = inlined_call_operand.vmem [shape: f32[1,32], index: 2, kind: input, shape index: {}]
  %s3 = inlined_call_operand.vmem [shape: f32[32,32], index: 3, kind: input, shape index: {}]
  %s4 = inlined_call_operand.vmem [shape: f32[1,32], index: 4, kind: input, shape index: {}]
  %s5 = inlined_call_operand.vmem [shape: f32[32,4], index: 5, kind: input, shape index: {}]
  %s6 = inlined_call_operand.vmem [shape: f32[1,4], index: 6, kind: input, shape index: {}]
  %s7 = inlined_call_operand.vmem [shape: f32[8,4], index: 7, kind: output, shape index: {}]
  %s8 = sld [smem:[#allocation0]]
  $region42: #{qnetwork_forward.1} parent=0
    _
  %s10 = ssub.s32 1, %s8
  %s11 = scalar_select 0, %s10, %s8
  $region1: #{qnetwork_forward.1} parent=0
    #allocation2 [shape = 'u8[4096]{0}', space=vmem, size = 0x1000, scoped, tag = 'input window, operand 0, single buffered']
    #allocation3 [shape = 's32[1]{0}', space=sflag, size = 0x4, scoped, tag = 'scoped memory for qnetwork_forward.1']
    %12 = vsyncpa [#allocation3], 0
    // Predicated region
    $region2: #{qnetwork_forward.1} parent=1 // pred_check
      _
    $region3: #{qnetwork_forward.1} parent=1 // pred_check_branch
      %14 = sbr.rel (0) target = $region5
    $region4: #{qnetwork_forward.1} parent=1 // pred_region
      %s16 = ssub.s32 128, 128
      %17 = vsyncadd [#allocation3], %s16
      %s19 = sshll.u32 [#allocation2], 4
      %s20 = int_to_ptr.vmem [resolvable:$true] %s19
      %22 = dma.hbm_to_vmem [thread:$0]  %s0, 128, %s20, [#allocation3]
    $region5: #{qnetwork_forward.1} parent=1 // pred_fallthru
      _
    // Predicated region
    $region6: #{qnetwork_forward.1} parent=1 // pred_check
      _
    $region7: #{qnetwork_forward.1} parent=1 // pred_check_branch
      %24 = sbr.rel (0) target = $region9
    $region8: #{qnetwork_forward.1} parent=1 // pred_region
      _
    $region9: #{qnetwork_forward.1} parent=1 // pred_fallthru
      _
    // Predicated region
    $region10: #{qnetwork_forward.1} parent=1 // pred_check
      _
    $region11: #{qnetwork_forward.1} parent=1 // pred_check_branch
      %26 = sbr.rel (0) target = $region13
    $region12: #{qnetwork_forward.1} parent=1 // pred_region
      _
    $region13: #{qnetwork_forward.1} parent=1 // pred_fallthru
      _
    // Predicated region
    $region14: #{qnetwork_forward.1} parent=1 // pred_check
      _
    $region15: #{qnetwork_forward.1} parent=1 // pred_check_branch
      %28 = sbr.rel (0) target = $region17
    $region16: #{qnetwork_forward.1} parent=1 // pred_region
      _
    $region17: #{qnetwork_forward.1} parent=1 // pred_fallthru
      _
    // Predicated region
    $region18: #{qnetwork_forward.1} parent=1 // pred_check
      _
    $region19: #{qnetwork_forward.1} parent=1 // pred_check_branch
      %30 = sbr.rel (0) target = $region21
    $region20: #{qnetwork_forward.1} parent=1 // pred_region
      _
    $region21: #{qnetwork_forward.1} parent=1 // pred_fallthru
      _
    // Predicated region
    $region22: #{qnetwork_forward.1} parent=1 // pred_check
      _
    $region23: #{qnetwork_forward.1} parent=1 // pred_check_branch
      %32 = sbr.rel (0) target = $region25
    $region24: #{qnetwork_forward.1} parent=1 // pred_region
      _
    $region25: #{qnetwork_forward.1} parent=1 // pred_fallthru
      _
    // Predicated region
    $region26: #{qnetwork_forward.1} parent=1 // pred_check
      _
    $region27: #{qnetwork_forward.1} parent=1 // pred_check_branch
      %34 = sbr.rel (0) target = $region29
    $region28: #{qnetwork_forward.1} parent=1 // pred_region
      _
    $region29: #{qnetwork_forward.1} parent=1 // pred_fallthru
      _
    // Predicated region
    $region30: #{qnetwork_forward.1} parent=1 // pred_check
      _
    $region31: #{qnetwork_forward.1} parent=1 // pred_check_branch
      %36 = sbr.rel (0) target = $region33
    $region32: #{qnetwork_forward.1} parent=1 // pred_region
      %37 = dma.done [#allocation3], 128
    $region33: #{qnetwork_forward.1} parent=1 // pred_fallthru
      _
    %v38 = vld [vmem:[#allocation2] sm:$0xff]
    %v39 = vld [vmem:[%s1] sm:$0xff]
    %v40 = vld [vmem:[%s1 + $0x8] sm:$0xff]
    %v41 = vld [vmem:[%s2] sm:$0x1]
    %v43 = vlaneseq
    %v44 = vshrl.u32 %v43, 7
    %v45 = vsub.s32 0, %v44
    %v46 = vrot.slane %v41, %v45
    %vm48 = vcmask 130048
    %v50 = vsel %vm48, %v38, 0
    %52 = vmatprep.subr.mxu0 0.0
    %53 = vmatpush1.msra.mxu0 %v39
    %54 = vmatprep.subr.mxu0 0.0
    %55 = vmatpush1.msra.mxu0 %v40
    %56 = vmatprep.subr.mxu0 0.0
    %57 = vmatpush1.msra.mxu0 0.0
    %58 = vmatprep.subr.mxu0 0.0
    %59 = vmatpush1.msra.mxu0 0.0
    %60 = vmatprep.subr.mxu0 0.0
    %61 = vmatpush1.msra.mxu0 0.0
    %62 = vmatprep.subr.mxu0 0.0
    %63 = vmatpush1.msra.mxu0 0.0
    %64 = vmatprep.subr.mxu0 0.0
    %65 = vmatpush1.msra.mxu0 0.0
    %66 = vmatprep.subr.mxu0 0.0
    %67 = vmatpush1.msra.mxu0 0.0
    %68 = vmatprep.subr.mxu0 0.0
    %69 = vmatpush1.msra.mxu0 0.0
    %70 = vmatprep.subr.mxu0 0.0
    %71 = vmatpush1.msra.mxu0 0.0
    %72 = vmatprep.subr.mxu0 0.0
    %73 = vmatpush1.msra.mxu0 0.0
    %74 = vmatprep.subr.mxu0 0.0
    %75 = vmatpush1.msra.mxu0 0.0
    %76 = vmatprep.subr.mxu0 0.0
    %77 = vmatpush1.msra.mxu0 0.0
    %78 = vmatprep.subr.mxu0 0.0
    %79 = vmatpush1.msra.mxu0 0.0
    %80 = vmatprep.subr.mxu0 0.0
    %81 = vmatpush1.msra.mxu0 0.0
    %82 = vmatprep.subr.mxu0 0.0
    %83 = vmatpush1.msra.mxu0 0.0
    %84 = vmatprep.subr.mxu0 0.0
    %85 = vmatpush1.msra.mxu0 0.0
    %86 = vmatprep.subr.mxu0 0.0
    %87 = vmatpush1.msra.mxu0 0.0
    %88 = vmatprep.subr.mxu0 0.0
    %89 = vmatpush1.msra.mxu0 0.0
    %90 = vmatprep.subr.mxu0 0.0
    %91 = vmatpush1.msra.mxu0 0.0
    %92 = vmatprep.subr.mxu0 0.0
    %93 = vmatpush1.msra.mxu0 0.0
    %94 = vmatprep.subr.mxu0 0.0
    %95 = vmatpush1.msra.mxu0 0.0
    %96 = vmatprep.subr.mxu0 0.0
    %97 = vmatpush1.msra.mxu0 0.0
    %98 = vmatprep.subr.mxu0 0.0
    %99 = vmatpush1.msra.mxu0 0.0
    %100 = vmatprep.subr.mxu0 0.0
    %101 = vmatpush1.msra.mxu0 0.0
    %102 = vmatprep.subr.mxu0 0.0
    %103 = vmatpush1.msra.mxu0 0.0
    %104 = vmatprep.subr.mxu0 0.0
    %105 = vmatpush1.msra.mxu0 0.0
    %106 = vmatprep.subr.mxu0 0.0
    %107 = vmatpush1.msra.mxu0 0.0
    %108 = vmatprep.subr.mxu0 0.0
    %109 = vmatpush1.msra.mxu0 0.0
    %110 = vmatprep.subr.mxu0 0.0
    %111 = vmatpush1.msra.mxu0 0.0
    %112 = vmatprep.subr.mxu0 0.0
    %113 = vmatpush1.msra.mxu0 0.0
    %114 = vmatprep.subr.mxu0 0.0
    %115 = vmatpush1.msra.mxu0 0.0
    %116 = vmatprep.mubr.f32.mxu0 0.0
    %117 = vmatmul.mubr.f32.gmra.mrb[0].mxu0 %v50
    %v118 = vpop.f32.mrb[0].mxu0
    %v119 = vadd.f32 %v46, %v118
    %v120 = vpop.f32.mrb[0].mxu0
    %121 = vdwg.mxu0
    %v122 = vmax.f32 %v119, 0.0
    %v123 = vld [vmem:[%s3] sm:$0xff]
    %v124 = vld [vmem:[%s3 + $0x8] sm:$0xff]
    %v125 = vld [vmem:[%s3 + $0x10] sm:$0xff]
    %v126 = vld [vmem:[%s3 + $0x18] sm:$0xff]
    %v127 = vld [vmem:[%s4] sm:$0x1]
    %v129 = vlaneseq
    %v130 = vshrl.u32 %v129, 7
    %v131 = vsub.s32 0, %v130
    %v132 = vrot.slane %v127, %v131
    %vm134 = vcmask 261120
    %v136 = vsel %vm134, %v122, 0
    %138 = vmatprep.subr.mxu0 0.0
    %139 = vmatpush1.msra.mxu0 %v123
    %140 = vmatprep.subr.mxu0 0.0
    %141 = vmatpush1.msra.mxu0 %v124
    %142 = vmatprep.subr.mxu0 0.0
    %143 = vmatpush1.msra.mxu0 %v125
    %144 = vmatprep.subr.mxu0 0.0
    %145 = vmatpush1.msra.mxu0 %v126
    %146 = vmatprep.subr.mxu0 0.0
    %147 = vmatpush1.msra.mxu0 0.0
    %148 = vmatprep.subr.mxu0 0.0
    %149 = vmatpush1.msra.mxu0 0.0
    %150 = vmatprep.subr.mxu0 0.0
    %151 = vmatpush1.msra.mxu0 0.0
    %152 = vmatprep.subr.mxu0 0.0
    %153 = vmatpush1.msra.mxu0 0.0
    %154 = vmatprep.subr.mxu0 0.0
    %155 = vmatpush1.msra.mxu0 0.0
    %156 = vmatprep.subr.mxu0 0.0
    %157 = vmatpush1.msra.mxu0 0.0
    %158 = vmatprep.subr.mxu0 0.0
    %159 = vmatpush1.msra.mxu0 0.0
    %160 = vmatprep.subr.mxu0 0.0
    %161 = vmatpush1.msra.mxu0 0.0
    %162 = vmatprep.subr.mxu0 0.0
    %163 = vmatpush1.msra.mxu0 0.0
    %164 = vmatprep.subr.mxu0 0.0
    %165 = vmatpush1.msra.mxu0 0.0
    %166 = vmatprep.subr.mxu0 0.0
    %167 = vmatpush1.msra.mxu0 0.0
    %168 = vmatprep.subr.mxu0 0.0
    %169 = vmatpush1.msra.mxu0 0.0
    %170 = vmatprep.subr.mxu0 0.0
    %171 = vmatpush1.msra.mxu0 0.0
    %172 = vmatprep.subr.mxu0 0.0
    %173 = vmatpush1.msra.mxu0 0.0
    %174 = vmatprep.subr.mxu0 0.0
    %175 = vmatpush1.msra.mxu0 0.0
    %176 = vmatprep.subr.mxu0 0.0
    %177 = vmatpush1.msra.mxu0 0.0
    %178 = vmatprep.subr.mxu0 0.0
    %179 = vmatpush1.msra.mxu0 0.0
    %180 = vmatprep.subr.mxu0 0.0
    %181 = vmatpush1.msra.mxu0 0.0
    %182 = vmatprep.subr.mxu0 0.0
    %183 = vmatpush1.msra.mxu0 0.0
    %184 = vmatprep.subr.mxu0 0.0
    %185 = vmatpush1.msra.mxu0 0.0
    %186 = vmatprep.subr.mxu0 0.0
    %187 = vmatpush1.msra.mxu0 0.0
    %188 = vmatprep.subr.mxu0 0.0
    %189 = vmatpush1.msra.mxu0 0.0
    %190 = vmatprep.subr.mxu0 0.0
    %191 = vmatpush1.msra.mxu0 0.0
    %192 = vmatprep.subr.mxu0 0.0
    %193 = vmatpush1.msra.mxu0 0.0
    %194 = vmatprep.subr.mxu0 0.0
    %195 = vmatpush1.msra.mxu0 0.0
    %196 = vmatprep.subr.mxu0 0.0
    %197 = vmatpush1.msra.mxu0 0.0
    %198 = vmatprep.subr.mxu0 0.0
    %199 = vmatpush1.msra.mxu0 0.0
    %200 = vmatprep.subr.mxu0 0.0
    %201 = vmatpush1.msra.mxu0 0.0
    %202 = vmatprep.mubr.f32.mxu0 0.0
    %203 = vmatmul.mubr.f32.gmra.mrb[0].mxu0 %v136
    %v204 = vpop.f32.mrb[0].mxu0
    %v205 = vadd.f32 %v132, %v204
    %v206 = vpop.f32.mrb[0].mxu0
    %207 = vdwg.mxu0
    %v208 = vmax.f32 %v205, 0.0
    %v209 = vld [vmem:[%s5] sm:$0xff]
    %v210 = vld [vmem:[%s5 + $0x8] sm:$0xff]
    %v211 = vld [vmem:[%s5 + $0x10] sm:$0xff]
    %v212 = vld [vmem:[%s5 + $0x18] sm:$0xff]
    %v213 = vld [vmem:[%s6] sm:$0x1]
    %v215 = vlaneseq
    %v216 = vshrl.u32 %v215, 7
    %v217 = vsub.s32 0, %v216
    %v218 = vrot.slane %v213, %v217
    %v221 = vsel %vm134, %v208, 0
    %223 = vmatprep.subr.mxu0 0.0
    %224 = vmatpush1.msra.mxu0 %v209
    %225 = vmatprep.subr.mxu0 0.0
    %226 = vmatpush1.msra.mxu0 %v210
    %227 = vmatprep.subr.mxu0 0.0
    %228 = vmatpush1.msra.mxu0 %v211
    %229 = vmatprep.subr.mxu0 0.0
    %230 = vmatpush1.msra.mxu0 %v212
    %231 = vmatprep.subr.mxu0 0.0
    %232 = vmatpush1.msra.mxu0 0.0
    %233 = vmatprep.subr.mxu0 0.0
    %234 = vmatpush1.msra.mxu0 0.0
    %235 = vmatprep.subr.mxu0 0.0
    %236 = vmatpush1.msra.mxu0 0.0
    %237 = vmatprep.subr.mxu0 0.0
    %238 = vmatpush1.msra.mxu0 0.0
    %239 = vmatprep.subr.mxu0 0.0
    %240 = vmatpush1.msra.mxu0 0.0
    %241 = vmatprep.subr.mxu0 0.0
    %242 = vmatpush1.msra.mxu0 0.0
    %243 = vmatprep.subr.mxu0 0.0
    %244 = vmatpush1.msra.mxu0 0.0
    %245 = vmatprep.subr.mxu0 0.0
    %246 = vmatpush1.msra.mxu0 0.0
    %247 = vmatprep.subr.mxu0 0.0
    %248 = vmatpush1.msra.mxu0 0.0
    %249 = vmatprep.subr.mxu0 0.0
    %250 = vmatpush1.msra.mxu0 0.0
    %251 = vmatprep.subr.mxu0 0.0
    %252 = vmatpush1.msra.mxu0 0.0
    %253 = vmatprep.subr.mxu0 0.0
    %254 = vmatpush1.msra.mxu0 0.0
    %255 = vmatprep.subr.mxu0 0.0
    %256 = vmatpush1.msra.mxu0 0.0
    %257 = vmatprep.subr.mxu0 0.0
    %258 = vmatpush1.msra.mxu0 0.0
    %259 = vmatprep.subr.mxu0 0.0
    %260 = vmatpush1.msra.mxu0 0.0
    %261 = vmatprep.subr.mxu0 0.0
    %262 = vmatpush1.msra.mxu0 0.0
    %263 = vmatprep.subr.mxu0 0.0
    %264 = vmatpush1.msra.mxu0 0.0
    %265 = vmatprep.subr.mxu0 0.0
    %266 = vmatpush1.msra.mxu0 0.0
    %267 = vmatprep.subr.mxu0 0.0
    %268 = vmatpush1.msra.mxu0 0.0
    %269 = vmatprep.subr.mxu0 0.0
    %270 = vmatpush1.msra.mxu0 0.0
    %271 = vmatprep.subr.mxu0 0.0
    %272 = vmatpush1.msra.mxu0 0.0
    %273 = vmatprep.subr.mxu0 0.0
    %274 = vmatpush1.msra.mxu0 0.0
    %275 = vmatprep.subr.mxu0 0.0
    %276 = vmatpush1.msra.mxu0 0.0
    %277 = vmatprep.subr.mxu0 0.0
    %278 = vmatpush1.msra.mxu0 0.0
    %279 = vmatprep.subr.mxu0 0.0
    %280 = vmatpush1.msra.mxu0 0.0
    %281 = vmatprep.subr.mxu0 0.0
    %282 = vmatpush1.msra.mxu0 0.0
    %283 = vmatprep.subr.mxu0 0.0
    %284 = vmatpush1.msra.mxu0 0.0
    %285 = vmatprep.subr.mxu0 0.0
    %286 = vmatpush1.msra.mxu0 0.0
    %287 = vmatprep.mubr.f32.mxu0 0.0
    %288 = vmatmul.mubr.f32.gmra.mrb[0].mxu0 %v221
    %v289 = vpop.f32.mrb[0].mxu0
    %v290 = vadd.f32 %v218, %v289
    %v291 = vpop.f32.mrb[0].mxu0
    %292 = vdwg.mxu0
    %vm293 = vcmask 31744
    %294 = vst.msk [vmem:[%s7] sm:$0xff] %vm293, %v290
    // Predicated region
    $region34: #{qnetwork_forward.1} parent=1 // pred_check
      _
    $region35: #{qnetwork_forward.1} parent=1 // pred_check_branch
      %296 = sbr.rel (0) target = $region37
    $region36: #{qnetwork_forward.1} parent=1 // pred_region
      _
    $region37: #{qnetwork_forward.1} parent=1 // pred_fallthru
      _
    // Predicated region
    $region38: #{qnetwork_forward.1} parent=1 // pred_check
      _
    $region39: #{qnetwork_forward.1} parent=1 // pred_check_branch
      %298 = sbr.rel (0) target = $region41
    $region40: #{qnetwork_forward.1} parent=1 // pred_region
      _
    $region41: #{qnetwork_forward.1} parent=1 // pred_fallthru
      _
    %299 = vsyncpa [#allocation3], 1

</llo_original>
